<compile_context>
chip_gen: v6e
topology: v6e:2x2x1
jax: 0.10.0
libtpu: 0.0.40
codegen_flags: <defaults>
</compile_context>

<pallas_src>
import jax
import jax.numpy as jnp
from jax.experimental import pallas as pl
from jax.experimental.pallas import tpu as pltpu


NEG_SLOPE = 0.01
_VMEM_LIMIT = 40 * 1024 * 1024    # explicit per-call cap, safe on v7x (64 MiB)
_VMEM_BUDGET = 36 * 1024 * 1024   # what the tile chooser plans for (headroom)


def _round_up(x, m):
    return ((x + m - 1) // m) * m


# ----------------------------- kernels ------------------------------------


def gcn_fused_small_kernel(a_ref, x_ref, w1_ref, b1_ref, w2_ref, b2_ref, o_ref):
    """Both GCN layers for graphs that fit entirely in VMEM (single launch)."""
    h = jnp.dot(x_ref[...], w1_ref[...], preferred_element_type=jnp.float32)
    h = jnp.dot(a_ref[...], h, preferred_element_type=jnp.float32) + b1_ref[...]
    h = jnp.where(h > 0, h, NEG_SLOPE * h)
    h = jnp.dot(h, w2_ref[...], preferred_element_type=jnp.float32)
    h = jnp.dot(a_ref[...], h, preferred_element_type=jnp.float32) + b2_ref[...]
    o_ref[...] = jnp.where(h > 0, h, NEG_SLOPE * h).astype(o_ref.dtype)


def gcn_linear_scale_kernel(x_ref, w_ref, d_ref, o_ref):
    """G1 = D^-1/2 (X @ W1): feature transform with the column-side degree
    scale folded in once, so the aggregations stream a pure 0/1 mask."""
    h = jnp.dot(x_ref[...], w_ref[...], preferred_element_type=jnp.float32)
    o_ref[...] = (d_ref[...] * h).astype(o_ref.dtype)


def gcn_agg1_fused_kernel(a_ref, g_ref, d_ref, b1_ref, w2_ref, o_ref, acc_ref):
    """acc = sum_k M[i,k] @ G1[k]  (k = reduction grid axis, f32 accumulator).
    Finalize: H1 = leaky_relu(D^-1/2 acc + b1); out = D^-1/2 (H1 @ W2) in bf16.
    Fusing the layer-2 transform here removes an HBM round trip of H1; the
    epilogue matmul hides under the next A-tile DMA on this DMA-bound kernel."""
    k = pl.program_id(1)

    @pl.when(k == 0)
    def _():
        acc_ref[...] = jnp.zeros_like(acc_ref)

    # int8 0/1 adjacency mask -> bf16 (exact values); int8 streaming halves the
    # HBM bytes of the operand this kernel is bandwidth-bound on.
    a = a_ref[...].astype(jnp.float32).astype(jnp.bfloat16)
    acc_ref[...] += jnp.dot(a, g_ref[...], preferred_element_type=jnp.float32)

    @pl.when(k == pl.num_programs(1) - 1)
    def _():
        z = d_ref[...] * acc_ref[...] + b1_ref[...]        # row scale + bias
        h1 = jnp.where(z > 0, z, NEG_SLOPE * z)            # leaky_relu (0.01)
        g2 = jnp.dot(h1.astype(jnp.bfloat16), w2_ref[...],
                     preferred_element_type=jnp.float32)   # fused layer-2 linear
        o_ref[...] = (d_ref[...] * g2).astype(o_ref.dtype)  # G2 = D^-1/2 H1 W2


def gcn_agg2_kernel(a_ref, g_ref, d_ref, b2_ref, o_ref, acc_ref):
    """Final aggregation: out = leaky_relu(D^-1/2 (sum_k M[i,k] @ G2[k]) + b2)."""
    k = pl.program_id(1)

    @pl.when(k == 0)
    def _():
        acc_ref[...] = jnp.zeros_like(acc_ref)

    a = a_ref[...].astype(jnp.float32).astype(jnp.bfloat16)
    acc_ref[...] += jnp.dot(a, g_ref[...], preferred_element_type=jnp.float32)

    @pl.when(k == pl.num_programs(1) - 1)
    def _():
        z = d_ref[...] * acc_ref[...] + b2_ref[...]
        o_ref[...] = jnp.where(z > 0, z, NEG_SLOPE * z).astype(o_ref.dtype)


# --------------------------- tile selection ---------------------------------


def _choose_agg_tiles(n_pad, e_pad):
    """Largest (tm, tk) whose planned VMEM footprint fits the budget."""
    def vmem_bytes(tm, tk):
        a = 3 * tm * tk * 1              # int8 mask tiles, Buffered(3)
        conv = tm * tk * (4 + 2)         # in-kernel int8->f32->bf16 temporaries
        g = 2 * tk * e_pad * 2           # bf16 H tiles, double-buffered
        o = 2 * tm * e_pad * 4           # output tiles (<= f32), double-buffered
        acc = tm * e_pad * 4             # f32 accumulator scratch
        w2 = 2 * e_pad * e_pad * 2       # resident W2 for the fused epilogue
        eps = 2 * (tm * 4 + e_pad * 4) + 4 * tm * e_pad   # d/bias + epilogue temps
        return a + conv + g + o + acc + w2 + eps

    tm_cands = [t for t in (1024, 512, 256, 128) if n_pad % t == 0]
    tk_cands = [t for t in (4096, 2048, 1024, 512, 256, 128) if n_pad % t == 0]
    # Prefer >= 4 row tiles so the "parallel" axis balances across v7x's two
    # TensorCores, then fall back to the largest row tile that divides n_pad.
    preferred = [t for t in tm_cands if n_pad // t >= 4] or tm_cands
    order = preferred + [t for t in tm_cands if t not in preferred]
    for tm in order:
        for tk in tk_cands:
            if vmem_bytes(tm, tk) <= _VMEM_BUDGET:
                return tm, tk
    return tm_cands[-1], tk_cands[-1]


def _choose_linear_tile(n_pad, f_pad, e_pad):
    def vmem_bytes(tm):
        return (2 * tm * f_pad * 2 + 2 * f_pad * e_pad * 2
                + 2 * tm * e_pad * 2 + 2 * tm * 4 + 4 * tm * e_pad)
    for tm in (1024, 512, 256, 128):
        if n_pad % tm == 0 and vmem_bytes(tm) <= _VMEM_BUDGET:
            return tm
    return 128


# --------------------------- pallas_call wrappers ---------------------------


def _fused_small(a_hat, x, w1, b1, w2, b2):
    n_pad, f_pad = x.shape
    e_pad = w1.shape[1]
    flops = 2 * n_pad * e_pad * (f_pad + n_pad + e_pad + n_pad)
    bytes_accessed = int(4 * (a_hat.size + x.size + w1.size + w2.size
                              + b1.size + b2.size + n_pad * e_pad))
    return pl.pallas_call(
        gcn_fused_small_kernel,
        out_shape=jax.ShapeDtypeStruct((n_pad, e_pad), jnp.float32),
        compiler_params=pltpu.CompilerParams(vmem_limit_bytes=_VMEM_LIMIT),
        cost_estimate=pl.CostEstimate(
            flops=flops, transcendentals=0, bytes_accessed=bytes_accessed),
    )(a_hat, x, w1, b1, w2, b2)


def _linear_scaled(x, w, d, tm):
    n_pad, f_pad = x.shape
    e_pad = w.shape[1]
    return pl.pallas_call(
        gcn_linear_scale_kernel,
        out_shape=jax.ShapeDtypeStruct((n_pad, e_pad), jnp.bfloat16),
        grid=(n_pad // tm,),
        in_specs=[
            pl.BlockSpec((tm, f_pad), lambda i: (i, 0)),     # X row tile
            pl.BlockSpec((f_pad, e_pad), lambda i: (0, 0)),  # W1 (resident)
            pl.BlockSpec((tm, 1), lambda i: (i, 0)),         # d^-1/2 row tile
        ],
        out_specs=pl.BlockSpec((tm, e_pad), lambda i: (i, 0)),
        compiler_params=pltpu.CompilerParams(
            dimension_semantics=("parallel",),
            vmem_limit_bytes=_VMEM_LIMIT),
        cost_estimate=pl.CostEstimate(
            flops=2 * n_pad * f_pad * e_pad, transcendentals=0,
            bytes_accessed=int(x.size * 2 + w.size * 2 + d.size * 4
                               + n_pad * e_pad * 2)),
    )(x, w, d)


def _agg1_fused(mask, g1, d, b1, w2, tm, tk):
    n_pad = mask.shape[0]
    e_pad = g1.shape[1]
    flops = 2 * n_pad * n_pad * e_pad + 2 * n_pad * e_pad * e_pad
    bytes_accessed = int(
        mask.size * 1                              # A mask streamed once
        + g1.size * 2 * (n_pad // tm)              # H re-streamed per row tile
        + w2.size * 2 + d.size * 4 + b1.size * 4
        + n_pad * e_pad * 2)
    return pl.pallas_call(
        gcn_agg1_fused_kernel,
        out_shape=jax.ShapeDtypeStruct((n_pad, e_pad), jnp.bfloat16),
        grid=(n_pad // tm, n_pad // tk),
        in_specs=[
            pl.BlockSpec((tm, tk), lambda i, k: (i, k),
                         pipeline_mode=pl.Buffered(3)),      # deeper pipeline on A
            pl.BlockSpec((tk, e_pad), lambda i, k: (k, 0)),  # G1 tile
            pl.BlockSpec((tm, 1), lambda i, k: (i, 0)),      # d^-1/2 row tile
            pl.BlockSpec((1, e_pad), lambda i, k: (0, 0)),   # bias (resident)
            pl.BlockSpec((e_pad, e_pad), lambda i, k: (0, 0)),  # W2 (resident)
        ],
        out_specs=pl.BlockSpec((tm, e_pad), lambda i, k: (i, 0)),
        scratch_shapes=[pltpu.VMEM((tm, e_pad), jnp.float32)],
        compiler_params=pltpu.CompilerParams(
            dimension_semantics=("parallel", "arbitrary"),
            vmem_limit_bytes=_VMEM_LIMIT),
        cost_estimate=pl.CostEstimate(
            flops=flops, transcendentals=0, bytes_accessed=bytes_accessed),
    )(mask, g1, d, b1, w2)


def _agg2(mask, g2, d, b2, tm, tk):
    n_pad = mask.shape[0]
    e_pad = g2.shape[1]
    bytes_accessed = int(
        mask.size * 1 + g2.size * 2 * (n_pad // tm)
        + d.size * 4 + b2.size * 4 + n_pad * e_pad * 4)
    return pl.pallas_call(
        gcn_agg2_kernel,
        out_shape=jax.ShapeDtypeStruct((n_pad, e_pad), jnp.float32),
        grid=(n_pad // tm, n_pad // tk),
        in_specs=[
            pl.BlockSpec((tm, tk), lambda i, k: (i, k),
                         pipeline_mode=pl.Buffered(3)),
            pl.BlockSpec((tk, e_pad), lambda i, k: (k, 0)),
            pl.BlockSpec((tm, 1), lambda i, k: (i, 0)),
            pl.BlockSpec((1, e_pad), lambda i, k: (0, 0)),
        ],
        out_specs=pl.BlockSpec((tm, e_pad), lambda i, k: (i, 0)),
        scratch_shapes=[pltpu.VMEM((tm, e_pad), jnp.float32)],
        compiler_params=pltpu.CompilerParams(
            dimension_semantics=("parallel", "arbitrary"),
            vmem_limit_bytes=_VMEM_LIMIT),
        cost_estimate=pl.CostEstimate(
            flops=2 * n_pad * n_pad * e_pad, transcendentals=0,
            bytes_accessed=bytes_accessed),
    )(mask, g2, d, b2)


# ------------------------------- glue --------------------------------------


def _build_mask_and_scale(edge_index, num_nodes):
    """Plain-JAX glue: dense 0/1 (A + I) mask and d^-1/2 from COO edge_index."""
    src = edge_index[0]
    dst = edge_index[1]
    m = jnp.zeros((num_nodes, num_nodes), jnp.float32)
    m = m.at[dst, src].add(1.0)                      # message flows src -> dst
    m = m + jnp.eye(num_nodes, dtype=jnp.float32)    # self loops
    deg = m.sum(axis=1)
    d_inv_sqrt = jnp.where(deg > 0, 1.0 / jnp.sqrt(deg), 0.0)
    return m, d_inv_sqrt


def gcn_net_forward(nodes_feature, edge_index, params):
    n, f = nodes_feature.shape
    e = params["w1"].shape[1]
    f_pad = _round_up(f, 128)
    e_pad = _round_up(e, 128)

    # TODO(synk): for large sparse graphs replace this dense O(N^2) adjacency
    # stream with a CSR/blocked-sparse gather (PrefetchScalarGridSpec row-ptr /
    # col-idx in SMEM driving the H index_map), and cache the mask / degree
    # scale across forward calls when the graph is static.
    m, d_inv_sqrt = _build_mask_and_scale(edge_index, n)

    n_small = _round_up(n, 128)
    small_vmem = 4 * (n_small * n_small + n_small * f_pad + f_pad * e_pad
                      + e_pad * e_pad + 2 * e_pad + 2 * n_small * e_pad)
    if n_small <= 512 and small_vmem <= 16 * 1024 * 1024:
        # Fully-fused single-kernel path: both layers resident in VMEM, f32.
        a_hat = d_inv_sqrt[:, None] * m * d_inv_sqrt[None, :]
        a_pad = jnp.zeros((n_small, n_small), jnp.float32).at[:n, :n].set(a_hat)
        x_pad = jnp.zeros((n_small, f_pad), jnp.float32).at[:n, :f].set(
            nodes_feature.astype(jnp.float32))
        w1 = jnp.zeros((f_pad, e_pad), jnp.float32).at[:f, :e].set(params["w1"])
        b1 = jnp.zeros((1, e_pad), jnp.float32).at[:, :e].set(params["b1"])
        w2 = jnp.zeros((e_pad, e_pad), jnp.float32).at[:e, :e].set(params["w2"])
        b2 = jnp.zeros((1, e_pad), jnp.float32).at[:, :e].set(params["b2"])
        out = _fused_small(a_pad, x_pad, w1, b1, w2, b2)
        return out[:n, :e]

    # ---- tiled path: int8 0/1 (A+I) mask, folded D^-1/2, fused W2 epilogue ----
    n_pad = _round_up(n, 512)
    tm, tk = _choose_agg_tiles(n_pad, e_pad)
    tm_lin = _choose_linear_tile(n_pad, f_pad, e_pad)

    mask = jnp.zeros((n_pad, n_pad), jnp.int8).at[:n, :n].set(m.astype(jnp.int8))
    d_pad = jnp.zeros((n_pad, 1), jnp.float32).at[:n, 0].set(d_inv_sqrt)
    x_pad = jnp.zeros((n_pad, f_pad), jnp.bfloat16).at[:n, :f].set(
        nodes_feature.astype(jnp.bfloat16))
    w1 = jnp.zeros((f_pad, e_pad), jnp.bfloat16).at[:f, :e].set(
        params["w1"].astype(jnp.bfloat16))
    b1 = jnp.zeros((1, e_pad), jnp.float32).at[:, :e].set(params["b1"])
    w2 = jnp.zeros((e_pad, e_pad), jnp.bfloat16).at[:e, :e].set(
        params["w2"].astype(jnp.bfloat16))
    b2 = jnp.zeros((1, e_pad), jnp.float32).at[:, :e].set(params["b2"])

    g1 = _linear_scaled(x_pad, w1, d_pad, tm_lin)        # D^-1/2 X W1
    g2 = _agg1_fused(mask, g1, d_pad, b1, w2, tm, tk)    # D^-1/2 leaky(A_hat X W1 + b1) W2
    out = _agg2(mask, g2, d_pad, b2, tm, tk)             # leaky(A_hat H1 W2 + b2)

    return out[:n, :e]


def gcn_net_reference(nodes_feature, edge_index, params):
    """Pure-JAX reference with identical semantics (for correctness checks)."""
    n = nodes_feature.shape[0]
    m, d_inv_sqrt = _build_mask_and_scale(edge_index, n)
    a_hat = d_inv_sqrt[:, None] * m * d_inv_sqrt[None, :]
    h = a_hat @ (nodes_feature @ params["w1"]) + params["b1"]
    h = jnp.where(h > 0, h, NEG_SLOPE * h)
    h = a_hat @ (h @ params["w2"]) + params["b2"]
    return jnp.where(h > 0, h, NEG_SLOPE * h)


def init_params(key, feature_dim, embedding_dim):
    """Deterministic glorot-style init for both GCNConv layers (bias = 0)."""
    k1, k2 = jax.random.split(key)
    s1 = jnp.sqrt(6.0 / (feature_dim + embedding_dim))
    s2 = jnp.sqrt(6.0 / (embedding_dim + embedding_dim))
    return {
        "w1": jax.random.uniform(k1, (feature_dim, embedding_dim),
                                 jnp.float32, -s1, s1),
        "b1": jnp.zeros((1, embedding_dim), jnp.float32),
        "w2": jax.random.uniform(k2, (embedding_dim, embedding_dim),
                                 jnp.float32, -s2, s2),
        "b2": jnp.zeros((1, embedding_dim), jnp.float32),
    }


if __name__ == "__main__":
    feature_dim = 16
    embedding_dim = 32

    key = jax.random.PRNGKey(0)
    k_feat, k_param, k_feat2 = jax.random.split(key, 3)
    params = init_params(k_param, feature_dim, embedding_dim)

    def make_ring_graph(num_nodes):
        # Deterministic undirected ring: edges i <-> (i+1) mod N, COO [2, 2N].
        idx = jnp.arange(num_nodes, dtype=jnp.int32)
        nxt = (idx + 1) % num_nodes
        return jnp.stack(
            [jnp.concatenate([idx, nxt]), jnp.concatenate([nxt, idx])], axis=0)

    # --- small graph: fully-fused single-kernel path ---
    num_nodes = 16
    x_small = jax.random.normal(k_feat, (num_nodes, feature_dim), jnp.float32)
    edges_small = make_ring_graph(num_nodes)
    out_small = jax.block_until_ready(
        gcn_net_forward(x_small, edges_small, params))
    assert out_small.shape == (num_nodes, embedding_dim)
    assert out_small.dtype == jnp.float32
    ref_small = gcn_net_reference(x_small, edges_small, params)
    assert bool(jnp.allclose(out_small, ref_small, rtol=5e-2, atol=5e-2))

    # --- larger graph: exercises the tiled int8-mask / bf16 pipelined path ---
    big_nodes = 1500
    x_big = jax.random.normal(k_feat2, (big_nodes, feature_dim), jnp.float32)
    edges_big = make_ring_graph(big_nodes)
    out_big = jax.block_until_ready(gcn_net_forward(x_big, edges_big, params))
    assert out_big.shape == (big_nodes, embedding_dim)
    assert out_big.dtype == jnp.float32
    ref_big = gcn_net_reference(x_big, edges_big, params)
    assert bool(jnp.allclose(out_big, ref_big, rtol=5e-2, atol=5e-2))

    print("KERNEL_OK")
</pallas_src>

<mosaic_0001>
module attributes {stable_mosaic.version = 11 : i64} {
  func.func @gcn_fused_small_kernel(%arg0: memref<128x128xf32, #tpu.memory_space<vmem>>, %arg1: memref<128x128xf32, #tpu.memory_space<vmem>>, %arg2: memref<128x128xf32, #tpu.memory_space<vmem>>, %arg3: memref<1x128xf32, #tpu.memory_space<vmem>>, %arg4: memref<128x128xf32, #tpu.memory_space<vmem>>, %arg5: memref<1x128xf32, #tpu.memory_space<vmem>>, %arg6: memref<128x128xf32, #tpu.memory_space<vmem>>) attributes {dimension_semantics = [], scalar_prefetch = 0 : i64, scratch_operands = 0 : i64, tpu.core_type = #tpu.core_type<tc>} {
    %c0 = arith.constant 0 : index
    %c0_0 = arith.constant 0 : index
    %0 = vector.load %arg1[%c0, %c0_0] : memref<128x128xf32, #tpu.memory_space<vmem>>, vector<128x128xf32>
    %c0_1 = arith.constant 0 : index
    %c0_2 = arith.constant 0 : index
    %1 = vector.load %arg2[%c0_1, %c0_2] : memref<128x128xf32, #tpu.memory_space<vmem>>, vector<128x128xf32>
    %cst = arith.constant dense<0.000000e+00> : vector<128x128xf32>
    %2 = tpu.matmul %0, %1, %cst {dimension_numbers = #tpu.dot_dimension_numbers<[1], [0], [0], [1], [0, 0, 1, 1], [], []>} : vector<128x128xf32>, vector<128x128xf32>, vector<128x128xf32> -> vector<128x128xf32>
    %c0_3 = arith.constant 0 : index
    %c0_4 = arith.constant 0 : index
    %3 = vector.load %arg0[%c0_3, %c0_4] : memref<128x128xf32, #tpu.memory_space<vmem>>, vector<128x128xf32>
    %cst_5 = arith.constant dense<0.000000e+00> : vector<128x128xf32>
    %4 = tpu.matmul %3, %2, %cst_5 {dimension_numbers = #tpu.dot_dimension_numbers<[1], [0], [0], [1], [0, 0, 1, 1], [], []>} : vector<128x128xf32>, vector<128x128xf32>, vector<128x128xf32> -> vector<128x128xf32>
    %c0_6 = arith.constant 0 : index
    %c0_7 = arith.constant 0 : index
    %5 = vector.load %arg3[%c0_6, %c0_7] : memref<1x128xf32, #tpu.memory_space<vmem>>, vector<1x128xf32>
    %6 = vector.broadcast %5 : vector<1x128xf32> to vector<128x128xf32>
    %7 = arith.addf %4, %6 : vector<128x128xf32>
    %cst_8 = arith.constant 0.000000e+00 : f32
    %8 = vector.broadcast %cst_8 : f32 to vector<128x128xf32>
    %9 = arith.cmpf ogt, %7, %8 : vector<128x128xf32>
    %cst_9 = arith.constant 0.00999999977 : f32
    %10 = vector.broadcast %cst_9 : f32 to vector<128x128xf32>
    %11 = arith.mulf %10, %7 : vector<128x128xf32>
    %12 = arith.select %9, %7, %11 : vector<128x128xi1>, vector<128x128xf32>
    %c0_10 = arith.constant 0 : index
    %c0_11 = arith.constant 0 : index
    %13 = vector.load %arg4[%c0_10, %c0_11] : memref<128x128xf32, #tpu.memory_space<vmem>>, vector<128x128xf32>
    %cst_12 = arith.constant dense<0.000000e+00> : vector<128x128xf32>
    %14 = tpu.matmul %12, %13, %cst_12 {dimension_numbers = #tpu.dot_dimension_numbers<[1], [0], [0], [1], [0, 0, 1, 1], [], []>} : vector<128x128xf32>, vector<128x128xf32>, vector<128x128xf32> -> vector<128x128xf32>
    %c0_13 = arith.constant 0 : index
    %c0_14 = arith.constant 0 : index
    %15 = vector.load %arg0[%c0_13, %c0_14] : memref<128x128xf32, #tpu.memory_space<vmem>>, vector<128x128xf32>
    %cst_15 = arith.constant dense<0.000000e+00> : vector<128x128xf32>
    %16 = tpu.matmul %15, %14, %cst_15 {dimension_numbers = #tpu.dot_dimension_numbers<[1], [0], [0], [1], [0, 0, 1, 1], [], []>} : vector<128x128xf32>, vector<128x128xf32>, vector<128x128xf32> -> vector<128x128xf32>
    %c0_16 = arith.constant 0 : index
    %c0_17 = arith.constant 0 : index
    %17 = vector.load %arg5[%c0_16, %c0_17] : memref<1x128xf32, #tpu.memory_space<vmem>>, vector<1x128xf32>
    %18 = vector.broadcast %17 : vector<1x128xf32> to vector<128x128xf32>
    %19 = arith.addf %16, %18 : vector<128x128xf32>
    %cst_18 = arith.constant 0.000000e+00 : f32
    %20 = vector.broadcast %cst_18 : f32 to vector<128x128xf32>
    %21 = arith.cmpf ogt, %19, %20 : vector<128x128xf32>
    %cst_19 = arith.constant 0.00999999977 : f32
    %22 = vector.broadcast %cst_19 : f32 to vector<128x128xf32>
    %23 = arith.mulf %22, %19 : vector<128x128xf32>
    %24 = arith.select %21, %19, %23 : vector<128x128xi1>, vector<128x128xf32>
    %c0_20 = arith.constant 0 : index
    %c0_21 = arith.constant 0 : index
    %25 = vector.load %arg6[%c0_20, %c0_21] : memref<128x128xf32, #tpu.memory_space<vmem>>, vector<128x128xf32>
    tpu.vector_store %arg6[%c0_20, %c0_21], %24 {strides = array<i32>} : memref<128x128xf32, #tpu.memory_space<vmem>>, vector<128x128xf32>,
    return
  }
}

</mosaic_0001>

<llo_original>
// kernel: tpu_custom_call.1
$region0: #{tpu_custom_call.1}
  #allocation0 [shape = 'u32[]', space=smem, size = 0x4, offset = 0x4, fixed_abs, tag = 'smem constant byte address 0x4 - core index']
  #allocation1 [shape = 'u32[144,128]{1,0:T(1,128)}', space=vmem, size = 0x12000, scoped, tag = 'internal scratch']
  %s0 = inlined_call_operand.hbm [shape: f32[128,128], index: 0, kind: input, shape index: {}]
  %s1 = inlined_call_operand.hbm [shape: f32[128,128], index: 1, kind: input, shape index: {}]
  %s2 = inlined_call_operand.hbm [shape: f32[128,128], index: 2, kind: input, shape index: {}]
  %s3 = inlined_call_operand.vmem [shape: f32[1,128], index: 3, kind: input, shape index: {}]
  %s4 = inlined_call_operand.hbm [shape: f32[128,128], index: 4, kind: input, shape index: {}]
  %s5 = inlined_call_operand.vmem [shape: f32[1,128], index: 5, kind: input, shape index: {}]
  %s6 = inlined_call_operand.hbm [shape: f32[128,128], index: 6, kind: output, shape index: {}]
  %s7 = sld [smem:[#allocation0]]
  $region50: #{tpu_custom_call.1} parent=0
    _
  %s9 = ssub.s32 1, %s7
  %s10 = scalar_select 0, %s9, %s7
  $region1: #{tpu_custom_call.1} parent=0
    #allocation2 [shape = 'u8[65536]{0}', space=vmem, size = 0x10000, scoped, tag = 'input window, operand 0, single buffered']
    #allocation3 [shape = 's32[1]{0}', space=sflag, size = 0x4, scoped, tag = 'scoped memory for tpu_custom_call.1']
    #allocation4 [shape = 's32[1]{0}', space=sflag, size = 0x4, scoped, tag = 'scoped memory for tpu_custom_call.1']
    #allocation5 [shape = 'u8[65536]{0}', space=vmem, size = 0x10000, scoped, tag = 'input window, operand 1, single buffered']
    #allocation6 [shape = 's32[1]{0}', space=sflag, size = 0x4, scoped, tag = 'scoped memory for tpu_custom_call.1']
    #allocation7 [shape = 'u8[65536]{0}', space=vmem, size = 0x10000, scoped, tag = 'input window, operand 2, single buffered']
    #allocation8 [shape = 'u8[65536]{0}', space=vmem, size = 0x10000, scoped, tag = 'input window, operand 4, single buffered']
    #allocation9 [shape = 's32[1]{0}', space=sflag, size = 0x4, scoped, tag = 'scoped memory for tpu_custom_call.1']
    #allocation10 [shape = 'u8[65536]{0}', space=vmem, size = 0x10000, scoped, tag = 'output window, operand 0, single buffered']
    %11 = vsyncpa [#allocation3], 0
    %12 = vsyncpa [#allocation6], 0
    %13 = vsyncpa [#allocation9], 0
    %14 = vsyncpa [#allocation4], 0
    // Predicated region
    $region2: #{tpu_custom_call.1} parent=1 // pred_check
      _
    $region3: #{tpu_custom_call.1} parent=1 // pred_check_branch
      %16 = sbr.rel (0) target = $region5
    $region4: #{tpu_custom_call.1} parent=1 // pred_region
      %s18 = ssub.s32 2048, 2048
      %19 = vsyncadd [#allocation3], %s18
      %s20 = sshll.u32 [#allocation2], 4
      %s21 = int_to_ptr.vmem [resolvable:$true] %s20
      %26 = dma.hbm_to_vmem [thread:$0]  %s0, 2048, %s21, [#allocation3], 128, 128, 8
    $region5: #{tpu_custom_call.1} parent=1 // pred_fallthru
      _
    // Predicated region
    $region6: #{tpu_custom_call.1} parent=1 // pred_check
      _
    $region7: #{tpu_custom_call.1} parent=1 // pred_check_branch
      %28 = sbr.rel (0) target = $region9
    $region8: #{tpu_custom_call.1} parent=1 // pred_region
      %s30 = ssub.s32 2048, 2048
      %31 = vsyncadd [#allocation6], %s30
      %s32 = sshll.u32 [#allocation5], 4
      %s33 = int_to_ptr.vmem [resolvable:$true] %s32
      %38 = dma.hbm_to_vmem [thread:$0]  %s1, 2048, %s33, [#allocation6], 128, 128, 8
    $region9: #{tpu_custom_call.1} parent=1 // pred_fallthru
      _
    // Predicated region
    $region10: #{tpu_custom_call.1} parent=1 // pred_check
      _
    $region11: #{tpu_custom_call.1} parent=1 // pred_check_branch
      %40 = sbr.rel (0) target = $region13
    $region12: #{tpu_custom_call.1} parent=1 // pred_region
      %s42 = ssub.s32 2048, 2048
      %43 = vsyncadd [#allocation6], %s42
      %s44 = sshll.u32 [#allocation7], 4
      %s45 = int_to_ptr.vmem [resolvable:$true] %s44
      %50 = dma.hbm_to_vmem [thread:$0]  %s2, 2048, %s45, [#allocation6], 128, 128, 8
    $region13: #{tpu_custom_call.1} parent=1 // pred_fallthru
      _
    // Predicated region
    $region14: #{tpu_custom_call.1} parent=1 // pred_check
      _
    $region15: #{tpu_custom_call.1} parent=1 // pred_check_branch
      %52 = sbr.rel (0) target = $region17
    $region16: #{tpu_custom_call.1} parent=1 // pred_region
      _
    $region17: #{tpu_custom_call.1} parent=1 // pred_fallthru
      _
    // Predicated region
    $region18: #{tpu_custom_call.1} parent=1 // pred_check
      _
    $region19: #{tpu_custom_call.1} parent=1 // pred_check_branch
      %54 = sbr.rel (0) target = $region21
    $region20: #{tpu_custom_call.1} parent=1 // pred_region
      %s56 = ssub.s32 2048, 2048
      %57 = vsyncadd [#allocation9], %s56
      %s58 = sshll.u32 [#allocation8], 4
      %s59 = int_to_ptr.vmem [resolvable:$true] %s58
      %64 = dma.hbm_to_vmem [thread:$0]  %s4, 2048, %s59, [#allocation9], 128, 128, 8
    $region21: #{tpu_custom_call.1} parent=1 // pred_fallthru
      _
    // Predicated region
    $region22: #{tpu_custom_call.1} parent=1 // pred_check
      _
    $region23: #{tpu_custom_call.1} parent=1 // pred_check_branch
      %66 = sbr.rel (0) target = $region25
    $region24: #{tpu_custom_call.1} parent=1 // pred_region
      _
    $region25: #{tpu_custom_call.1} parent=1 // pred_fallthru
      _
    // Predicated region
    $region26: #{tpu_custom_call.1} parent=1 // pred_check
      _
    $region27: #{tpu_custom_call.1} parent=1 // pred_check_branch
      %68 = sbr.rel (0) target = $region29
    $region28: #{tpu_custom_call.1} parent=1 // pred_region
      %69 = dma.done [#allocation3], 2048
    $region29: #{tpu_custom_call.1} parent=1 // pred_fallthru
      _
    // Predicated region
    $region30: #{tpu_custom_call.1} parent=1 // pred_check
      _
    $region31: #{tpu_custom_call.1} parent=1 // pred_check_branch
      %71 = sbr.rel (0) target = $region33
    $region32: #{tpu_custom_call.1} parent=1 // pred_region
      %72 = dma.done [#allocation6], 2048
    $region33: #{tpu_custom_call.1} parent=1 // pred_fallthru
      _
    // Predicated region
    $region34: #{tpu_custom_call.1} parent=1 // pred_check
      _
    $region35: #{tpu_custom_call.1} parent=1 // pred_check_branch
      %74 = sbr.rel (0) target = $region37
    $region36: #{tpu_custom_call.1} parent=1 // pred_region
      %75 = dma.done [#allocation6], 2048
    $region37: #{tpu_custom_call.1} parent=1 // pred_fallthru
      _
    // Predicated region
    $region38: #{tpu_custom_call.1} parent=1 // pred_check
      _
    $region39: #{tpu_custom_call.1} parent=1 // pred_check_branch
      %77 = sbr.rel (0) target = $region41
    $region40: #{tpu_custom_call.1} parent=1 // pred_region
      %78 = dma.done [#allocation9], 2048
    $region41: #{tpu_custom_call.1} parent=1 // pred_fallthru
      _
    %v79 = vld [vmem:[#allocation5] sm:$0xff]
    %v80 = vld [vmem:[#allocation5 + $0x8] sm:$0xff]
    %v81 = vld [vmem:[#allocation5 + $0x10] sm:$0xff]
    %v82 = vld [vmem:[#allocation5 + $0x18] sm:$0xff]
    %v83 = vld [vmem:[#allocation5 + $0x20] sm:$0xff]
    %v84 = vld [vmem:[#allocation5 + $0x28] sm:$0xff]
    %v85 = vld [vmem:[#allocation5 + $0x30] sm:$0xff]
    %v86 = vld [vmem:[#allocation5 + $0x38] sm:$0xff]
    %v87 = vld [vmem:[#allocation5 + $0x40] sm:$0xff]
    %v88 = vld [vmem:[#allocation5 + $0x48] sm:$0xff]
    %v89 = vld [vmem:[#allocation5 + $0x50] sm:$0xff]
    %v90 = vld [vmem:[#allocation5 + $0x58] sm:$0xff]
    %v91 = vld [vmem:[#allocation5 + $0x60] sm:$0xff]
    %v92 = vld [vmem:[#allocation5 + $0x68] sm:$0xff]
    %v93 = vld [vmem:[#allocation5 + $0x70] sm:$0xff]
    %v94 = vld [vmem:[#allocation5 + $0x78] sm:$0xff]
    %v95 = vld [vmem:[#allocation7] sm:$0xff]
    %v96 = vld [vmem:[#allocation7 + $0x8] sm:$0xff]
    %v97 = vld [vmem:[#allocation7 + $0x10] sm:$0xff]
    %v98 = vld [vmem:[#allocation7 + $0x18] sm:$0xff]
    %v99 = vld [vmem:[#allocation7 + $0x20] sm:$0xff]
    %v100 = vld [vmem:[#allocation7 + $0x28] sm:$0xff]
    %v101 = vld [vmem:[#allocation7 + $0x30] sm:$0xff]
    %v102 = vld [vmem:[#allocation7 + $0x38] sm:$0xff]
    %v103 = vld [vmem:[#allocation7 + $0x40] sm:$0xff]
    %v104 = vld [vmem:[#allocation7 + $0x48] sm:$0xff]
    %v105 = vld [vmem:[#allocation7 + $0x50] sm:$0xff]
    %v106 = vld [vmem:[#allocation7 + $0x58] sm:$0xff]
    %v107 = vld [vmem:[#allocation7 + $0x60] sm:$0xff]
    %v108 = vld [vmem:[#allocation7 + $0x68] sm:$0xff]
    %v109 = vld [vmem:[#allocation7 + $0x70] sm:$0xff]
    %v110 = vld [vmem:[#allocation7 + $0x78] sm:$0xff]
    %111 = vmatprep.subr.mxu0 0.0
    %112 = vmatpush1.msra.mxu0 %v110
    %113 = vmatprep.subr.mxu0 0.0
    %114 = vmatpush1.msra.mxu0 %v109
    %115 = vmatprep.subr.mxu0 0.0
    %116 = vmatpush1.msra.mxu0 %v108
    %117 = vmatprep.subr.mxu0 0.0
    %118 = vmatpush1.msra.mxu0 %v107
    %119 = vmatprep.subr.mxu0 0.0
    %120 = vmatpush1.msra.mxu0 %v106
    %121 = vmatprep.subr.mxu0 0.0
    %122 = vmatpush1.msra.mxu0 %v105
    %123 = vmatprep.subr.mxu0 0.0
    %124 = vmatpush1.msra.mxu0 %v104
    %125 = vmatprep.subr.mxu0 0.0
    %126 = vmatpush1.msra.mxu0 %v103
    %127 = vmatprep.subr.mxu0 0.0
    %128 = vmatpush1.msra.mxu0 %v102
    %129 = vmatprep.subr.mxu0 0.0
    %130 = vmatpush1.msra.mxu0 %v101
    %131 = vmatprep.subr.mxu0 0.0
    %132 = vmatpush1.msra.mxu0 %v100
    %133 = vmatprep.subr.mxu0 0.0
    %134 = vmatpush1.msra.mxu0 %v99
    %135 = vmatprep.subr.mxu0 0.0
    %136 = vmatpush1.msra.mxu0 %v98
    %137 = vmatprep.subr.mxu0 0.0
    %138 = vmatpush1.msra.mxu0 %v97
    %139 = vmatprep.subr.mxu0 0.0
    %140 = vmatpush1.msra.mxu0 %v96
    %141 = vmatprep.subr.mxu0 0.0
    %142 = vmatpush1.msra.mxu0 %v95
    %143 = vmatprep.subr.mxu0 0.0
    %144 = vmatpush2.msra.mxu0 0.0
    %145 = vmatprep.subr.mxu0 0.0
    %146 = vmatpush2.msra.mxu0 0.0
    %147 = vmatprep.subr.mxu0 0.0
    %148 = vmatpush2.msra.mxu0 0.0
    %149 = vmatprep.subr.mxu0 0.0
    %150 = vmatpush2.msra.mxu0 0.0
    %151 = vmatprep.subr.mxu0 0.0
    %152 = vmatpush2.msra.mxu0 0.0
    %153 = vmatprep.subr.mxu0 0.0
    %154 = vmatpush2.msra.mxu0 0.0
    %155 = vmatprep.subr.mxu0 0.0
    %156 = vmatpush2.msra.mxu0 0.0
    %157 = vmatprep.subr.mxu0 0.0
    %158 = vmatpush2.msra.mxu0 0.0
    %159 = vmatprep.subr.mxu0 0.0
    %160 = vmatpush2.msra.mxu0 0.0
    %161 = vmatprep.subr.mxu0 0.0
    %162 = vmatpush2.msra.mxu0 0.0
    %163 = vmatprep.subr.mxu0 0.0
    %164 = vmatpush2.msra.mxu0 0.0
    %165 = vmatprep.subr.mxu0 0.0
    %166 = vmatpush2.msra.mxu0 0.0
    %167 = vmatprep.subr.mxu0 0.0
    %168 = vmatpush2.msra.mxu0 0.0
    %169 = vmatprep.subr.mxu0 0.0
    %170 = vmatpush2.msra.mxu0 0.0
    %171 = vmatprep.subr.mxu0 0.0
    %172 = vmatpush2.msra.mxu0 0.0
    %173 = vmatprep.subr.mxu0 0.0
    %174 = vmatpush2.msra.mxu0 0.0
    %175 = vmatprep.mubr.f32.mxu0 0.0
    %176 = vmatmul.mubr.f32.gmra.mxu0 %v79
    %v177 = vpop.f32.mrf.mxu0
    %v178 = vadd.f32 0.0, %v177
    %v179 = vpop.f32.mrf.mxu0
    %180 = vmatprep.mubr.f32.mxu0 0.0
    %181 = vmatmul.mubr.f32.gmra.mxu0 %v80
    %v182 = vpop.f32.mrf.mxu0
    %v183 = vadd.f32 0.0, %v182
    %v184 = vpop.f32.mrf.mxu0
    %185 = vmatprep.mubr.f32.mxu0 0.0
    %186 = vmatmul.mubr.f32.gmra.mxu0 %v81
    %v187 = vpop.f32.mrf.mxu0
    %v188 = vadd.f32 0.0, %v187
    %v189 = vpop.f32.mrf.mxu0
    %190 = vmatprep.mubr.f32.mxu0 0.0
    %191 = vmatmul.mubr.f32.gmra.mxu0 %v82
    %v192 = vpop.f32.mrf.mxu0
    %v193 = vadd.f32 0.0, %v192
    %v194 = vpop.f32.mrf.mxu0
    %195 = vmatprep.mubr.f32.mxu0 0.0
    %196 = vmatmul.mubr.f32.gmra.mxu0 %v83
    %v197 = vpop.f32.mrf.mxu0
    %v198 = vadd.f32 0.0, %v197
    %v199 = vpop.f32.mrf.mxu0
    %200 = vmatprep.mubr.f32.mxu0 0.0
    %201 = vmatmul.mubr.f32.gmra.mxu0 %v84
    %v202 = vpop.f32.mrf.mxu0
    %v203 = vadd.f32 0.0, %v202
    %v204 = vpop.f32.mrf.mxu0
    %205 = vmatprep.mubr.f32.mxu0 0.0
    %206 = vmatmul.mubr.f32.gmra.mxu0 %v85
    %v207 = vpop.f32.mrf.mxu0
    %v208 = vadd.f32 0.0, %v207
    %v209 = vpop.f32.mrf.mxu0
    %210 = vmatprep.mubr.f32.mxu0 0.0
    %211 = vmatmul.mubr.f32.gmra.mxu0 %v86
    %v212 = vpop.f32.mrf.mxu0
    %v213 = vadd.f32 0.0, %v212
    %v214 = vpop.f32.mrf.mxu0
    %215 = vmatprep.mubr.f32.mxu0 0.0
    %216 = vmatmul.mubr.f32.gmra.mxu0 %v87
    %v217 = vpop.f32.mrf.mxu0
    %v218 = vadd.f32 0.0, %v217
    %v219 = vpop.f32.mrf.mxu0
    %220 = vmatprep.mubr.f32.mxu0 0.0
    %221 = vmatmul.mubr.f32.gmra.mxu0 %v88
    %v222 = vpop.f32.mrf.mxu0
    %v223 = vadd.f32 0.0, %v222
    %v224 = vpop.f32.mrf.mxu0
    %225 = vmatprep.mubr.f32.mxu0 0.0
    %226 = vmatmul.mubr.f32.gmra.mxu0 %v89
    %v227 = vpop.f32.mrf.mxu0
    %v228 = vadd.f32 0.0, %v227
    %v229 = vpop.f32.mrf.mxu0
    %230 = vmatprep.mubr.f32.mxu0 0.0
    %231 = vmatmul.mubr.f32.gmra.mxu0 %v90
    %v232 = vpop.f32.mrf.mxu0
    %v233 = vadd.f32 0.0, %v232
    %v234 = vpop.f32.mrf.mxu0
    %235 = vmatprep.mubr.f32.mxu0 0.0
    %236 = vmatmul.mubr.f32.gmra.mxu0 %v91
    %v237 = vpop.f32.mrf.mxu0
    %v238 = vadd.f32 0.0, %v237
    %v239 = vpop.f32.mrf.mxu0
    %240 = vmatprep.mubr.f32.mxu0 0.0
    %241 = vmatmul.mubr.f32.gmra.mxu0 %v92
    %v242 = vpop.f32.mrf.mxu0
    %v243 = vadd.f32 0.0, %v242
    %v244 = vpop.f32.mrf.mxu0
    %245 = vmatprep.mubr.f32.mxu0 0.0
    %246 = vmatmul.mubr.f32.gmra.mxu0 %v93
    %v247 = vpop.f32.mrf.mxu0
    %v248 = vadd.f32 0.0, %v247
    %v249 = vpop.f32.mrf.mxu0
    %250 = vmatprep.mubr.f32.mxu0 0.0
    %251 = vmatmul.mubr.f32.gmra.mxu0 %v94
    %v252 = vpop.f32.mrf.mxu0
    %v253 = vadd.f32 0.0, %v252
    %v254 = vpop.f32.mrf.mxu0
    %255 = vdwg.mxu0
    %v256 = vld [vmem:[#allocation2] sm:$0xff]
    %v257 = vld [vmem:[#allocation2 + $0x8] sm:$0xff]
    %v258 = vld [vmem:[#allocation2 + $0x10] sm:$0xff]
    %v259 = vld [vmem:[#allocation2 + $0x18] sm:$0xff]
    %v260 = vld [vmem:[#allocation2 + $0x20] sm:$0xff]
    %v261 = vld [vmem:[#allocation2 + $0x28] sm:$0xff]
    %v262 = vld [vmem:[#allocation2 + $0x30] sm:$0xff]
    %v263 = vld [vmem:[#allocation2 + $0x38] sm:$0xff]
    %v264 = vld [vmem:[#allocation2 + $0x40] sm:$0xff]
    %v265 = vld [vmem:[#allocation2 + $0x48] sm:$0xff]
    %v266 = vld [vmem:[#allocation2 + $0x50] sm:$0xff]
    %v267 = vld [vmem:[#allocation2 + $0x58] sm:$0xff]
    %v268 = vld [vmem:[#allocation2 + $0x60] sm:$0xff]
    %v269 = vld [vmem:[#allocation2 + $0x68] sm:$0xff]
    %v270 = vld [vmem:[#allocation2 + $0x70] sm:$0xff]
    %v271 = vld [vmem:[#allocation2 + $0x78] sm:$0xff]
    %v272 = vld [vmem:[%s3] sm:$0x1]
    %v274 = vlaneseq
    %v275 = vshrl.u32 %v274, 7
    %v276 = vsub.s32 0, %v275
    %v277 = vrot.slane %v272, %v276
    %279 = vmatprep.subr.mxu0 0.0
    %280 = vmatpush1.msra.mxu0 %v253
    %281 = vmatprep.subr.mxu0 0.0
    %282 = vmatpush1.msra.mxu0 %v248
    %283 = vmatprep.subr.mxu0 0.0
    %284 = vmatpush1.msra.mxu0 %v243
    %285 = vmatprep.subr.mxu0 0.0
    %286 = vmatpush1.msra.mxu0 %v238
    %287 = vmatprep.subr.mxu0 0.0
    %288 = vmatpush1.msra.mxu0 %v233
    %289 = vmatprep.subr.mxu0 0.0
    %290 = vmatpush1.msra.mxu0 %v228
    %291 = vmatprep.subr.mxu0 0.0
    %292 = vmatpush1.msra.mxu0 %v223
    %293 = vmatprep.subr.mxu0 0.0
    %294 = vmatpush1.msra.mxu0 %v218
    %295 = vmatprep.subr.mxu0 0.0
    %296 = vmatpush1.msra.mxu0 %v213
    %297 = vmatprep.subr.mxu0 0.0
    %298 = vmatpush1.msra.mxu0 %v208
    %299 = vmatprep.subr.mxu0 0.0
    %300 = vmatpush1.msra.mxu0 %v203
    %301 = vmatprep.subr.mxu0 0.0
    %302 = vmatpush1.msra.mxu0 %v198
    %303 = vmatprep.subr.mxu0 0.0
    %304 = vmatpush1.msra.mxu0 %v193
    %305 = vmatprep.subr.mxu0 0.0
    %306 = vmatpush1.msra.mxu0 %v188
    %307 = vmatprep.subr.mxu0 0.0
    %308 = vmatpush1.msra.mxu0 %v183
    %309 = vmatprep.subr.mxu0 0.0
    %310 = vmatpush1.msra.mxu0 %v178
    %311 = vmatprep.subr.mxu0 0.0
    %312 = vmatpush2.msra.mxu0 0.0
    %313 = vmatprep.subr.mxu0 0.0
    %314 = vmatpush2.msra.mxu0 0.0
    %315 = vmatprep.subr.mxu0 0.0
    %316 = vmatpush2.msra.mxu0 0.0
    %317 = vmatprep.subr.mxu0 0.0
    %318 = vmatpush2.msra.mxu0 0.0
    %319 = vmatprep.subr.mxu0 0.0
    %320 = vmatpush2.msra.mxu0 0.0
    %321 = vmatprep.subr.mxu0 0.0
    %322 = vmatpush2.msra.mxu0 0.0
    %323 = vmatprep.subr.mxu0 0.0
    %324 = vmatpush2.msra.mxu0 0.0
    %325 = vmatprep.subr.mxu0 0.0
    %326 = vmatpush2.msra.mxu0 0.0
    %327 = vmatprep.subr.mxu0 0.0
    %328 = vmatpush2.msra.mxu0 0.0
    %329 = vmatprep.subr.mxu0 0.0
    %330 = vmatpush2.msra.mxu0 0.0
    %331 = vmatprep.subr.mxu0 0.0
    %332 = vmatpush2.msra.mxu0 0.0
    %333 = vmatprep.subr.mxu0 0.0
    %334 = vmatpush2.msra.mxu0 0.0
    %335 = vmatprep.subr.mxu0 0.0
    %336 = vmatpush2.msra.mxu0 0.0
    %337 = vmatprep.subr.mxu0 0.0
    %338 = vmatpush2.msra.mxu0 0.0
    %339 = vmatprep.subr.mxu0 0.0
    %340 = vmatpush2.msra.mxu0 0.0
    %341 = vmatprep.subr.mxu0 0.0
    %342 = vmatpush2.msra.mxu0 0.0
    %343 = vmatprep.mubr.f32.mxu0 0.0
    %344 = vmatmul.mubr.f32.gmra.mxu0 %v256
    %v345 = vpop.f32.mrf.mxu0
    %v346 = vadd.f32 %v277, %v345
    %v347 = vpop.f32.mrf.mxu0
    %348 = vmatprep.mubr.f32.mxu0 0.0
    %349 = vmatmul.mubr.f32.gmra.mxu0 %v257
    %v350 = vpop.f32.mrf.mxu0
    %v351 = vadd.f32 %v277, %v350
    %v352 = vpop.f32.mrf.mxu0
    %353 = vmatprep.mubr.f32.mxu0 0.0
    %354 = vmatmul.mubr.f32.gmra.mxu0 %v258
    %v355 = vpop.f32.mrf.mxu0
    %v356 = vadd.f32 %v277, %v355
    %v357 = vpop.f32.mrf.mxu0
    %358 = vmatprep.mubr.f32.mxu0 0.0
    %359 = vmatmul.mubr.f32.gmra.mxu0 %v259
    %v360 = vpop.f32.mrf.mxu0
    %v361 = vadd.f32 %v277, %v360
    %v362 = vpop.f32.mrf.mxu0
    %363 = vmatprep.mubr.f32.mxu0 0.0
    %364 = vmatmul.mubr.f32.gmra.mxu0 %v260
    %v365 = vpop.f32.mrf.mxu0
    %v366 = vadd.f32 %v277, %v365
    %v367 = vpop.f32.mrf.mxu0
    %368 = vmatprep.mubr.f32.mxu0 0.0
    %369 = vmatmul.mubr.f32.gmra.mxu0 %v261
    %v370 = vpop.f32.mrf.mxu0
    %v371 = vadd.f32 %v277, %v370
    %v372 = vpop.f32.mrf.mxu0
    %373 = vmatprep.mubr.f32.mxu0 0.0
    %374 = vmatmul.mubr.f32.gmra.mxu0 %v262
    %v375 = vpop.f32.mrf.mxu0
    %v376 = vadd.f32 %v277, %v375
    %v377 = vpop.f32.mrf.mxu0
    %378 = vmatprep.mubr.f32.mxu0 0.0
    %379 = vmatmul.mubr.f32.gmra.mxu0 %v263
    %v380 = vpop.f32.mrf.mxu0
    %v381 = vadd.f32 %v277, %v380
    %v382 = vpop.f32.mrf.mxu0
    %383 = vmatprep.mubr.f32.mxu0 0.0
    %384 = vmatmul.mubr.f32.gmra.mxu0 %v264
    %v385 = vpop.f32.mrf.mxu0
    %v386 = vadd.f32 %v277, %v385
    %v387 = vpop.f32.mrf.mxu0
    %388 = vmatprep.mubr.f32.mxu0 0.0
    %389 = vmatmul.mubr.f32.gmra.mxu0 %v265
    %v390 = vpop.f32.mrf.mxu0
    %v391 = vadd.f32 %v277, %v390
    %v392 = vpop.f32.mrf.mxu0
    %393 = vmatprep.mubr.f32.mxu0 0.0
    %394 = vmatmul.mubr.f32.gmra.mxu0 %v266
    %v395 = vpop.f32.mrf.mxu0
    %v396 = vadd.f32 %v277, %v395
    %v397 = vpop.f32.mrf.mxu0
    %398 = vmatprep.mubr.f32.mxu0 0.0
    %399 = vmatmul.mubr.f32.gmra.mxu0 %v267
    %v400 = vpop.f32.mrf.mxu0
    %v401 = vadd.f32 %v277, %v400
    %v402 = vpop.f32.mrf.mxu0
    %403 = vmatprep.mubr.f32.mxu0 0.0
    %404 = vmatmul.mubr.f32.gmra.mxu0 %v268
    %v405 = vpop.f32.mrf.mxu0
    %v406 = vadd.f32 %v277, %v405
    %v407 = vpop.f32.mrf.mxu0
    %408 = vmatprep.mubr.f32.mxu0 0.0
    %409 = vmatmul.mubr.f32.gmra.mxu0 %v269
    %v410 = vpop.f32.mrf.mxu0
    %v411 = vadd.f32 %v277, %v410
    %v412 = vpop.f32.mrf.mxu0
    %413 = vmatprep.mubr.f32.mxu0 0.0
    %414 = vmatmul.mubr.f32.gmra.mxu0 %v270
    %v415 = vpop.f32.mrf.mxu0
    %v416 = vadd.f32 %v277, %v415
    %v417 = vpop.f32.mrf.mxu0
    %418 = vmatprep.mubr.f32.mxu0 0.0
    %419 = vmatmul.mubr.f32.gmra.mxu0 %v271
    %v420 = vpop.f32.mrf.mxu0
    %v421 = vadd.f32 %v277, %v420
    %v422 = vpop.f32.mrf.mxu0
    %423 = vdwg.mxu0
    %vm424 = vcmp.gt.f32.partialorder %v346, 0.0
    %vm425 = vcmp.gt.f32.partialorder %v351, 0.0
    %vm426 = vcmp.gt.f32.partialorder %v356, 0.0
    %vm427 = vcmp.gt.f32.partialorder %v361, 0.0
    %vm428 = vcmp.gt.f32.partialorder %v366, 0.0
    %vm429 = vcmp.gt.f32.partialorder %v371, 0.0
    %vm430 = vcmp.gt.f32.partialorder %v376, 0.0
    %vm431 = vcmp.gt.f32.partialorder %v381, 0.0
    %vm432 = vcmp.gt.f32.partialorder %v386, 0.0
    %vm433 = vcmp.gt.f32.partialorder %v391, 0.0
    %vm434 = vcmp.gt.f32.partialorder %v396, 0.0
    %vm435 = vcmp.gt.f32.partialorder %v401, 0.0
    %vm436 = vcmp.gt.f32.partialorder %v406, 0.0
    %vm437 = vcmp.gt.f32.partialorder %v411, 0.0
    %vm438 = vcmp.gt.f32.partialorder %v416, 0.0
    %vm439 = vcmp.gt.f32.partialorder %v421, 0.0
    %v440 = vmul.f32 %v346, 0.01
    %v441 = vmul.f32 %v351, 0.01
    %v442 = vmul.f32 %v356, 0.01
    %v443 = vmul.f32 %v361, 0.01
    %v444 = vmul.f32 %v366, 0.01
    %v445 = vmul.f32 %v371, 0.01
    %v446 = vmul.f32 %v376, 0.01
    %v447 = vmul.f32 %v381, 0.01
    %v448 = vmul.f32 %v386, 0.01
    %v449 = vmul.f32 %v391, 0.01
    %v450 = vmul.f32 %v396, 0.01
    %v451 = vmul.f32 %v401, 0.01
    %v452 = vmul.f32 %v406, 0.01
    %v453 = vmul.f32 %v411, 0.01
    %v454 = vmul.f32 %v416, 0.01
    %v455 = vmul.f32 %v421, 0.01
    %v456 = vsel %vm424, %v346, %v440
    %v457 = vsel %vm425, %v351, %v441
    %v458 = vsel %vm426, %v356, %v442
    %v459 = vsel %vm427, %v361, %v443
    %v460 = vsel %vm428, %v366, %v444
    %v461 = vsel %vm429, %v371, %v445
    %v462 = vsel %vm430, %v376, %v446
    %v463 = vsel %vm431, %v381, %v447
    %v464 = vsel %vm432, %v386, %v448
    %v465 = vsel %vm433, %v391, %v449
    %v466 = vsel %vm434, %v396, %v450
    %v467 = vsel %vm435, %v401, %v451
    %v468 = vsel %vm436, %v406, %v452
    %v469 = vsel %vm437, %v411, %v453
    %v470 = vsel %vm438, %v416, %v454
    %v471 = vsel %vm439, %v421, %v455
    %v472 = vld [vmem:[#allocation8] sm:$0xff]
    %v473 = vld [vmem:[#allocation8 + $0x8] sm:$0xff]
    %v474 = vld [vmem:[#allocation8 + $0x10] sm:$0xff]
    %v475 = vld [vmem:[#allocation8 + $0x18] sm:$0xff]
    %v476 = vld [vmem:[#allocation8 + $0x20] sm:$0xff]
    %v477 = vld [vmem:[#allocation8 + $0x28] sm:$0xff]
    %v478 = vld [vmem:[#allocation8 + $0x30] sm:$0xff]
    %v479 = vld [vmem:[#allocation8 + $0x38] sm:$0xff]
    %v480 = vld [vmem:[#allocation8 + $0x40] sm:$0xff]
    %v481 = vld [vmem:[#allocation8 + $0x48] sm:$0xff]
    %v482 = vld [vmem:[#allocation8 + $0x50] sm:$0xff]
    %v483 = vld [vmem:[#allocation8 + $0x58] sm:$0xff]
    %v484 = vld [vmem:[#allocation8 + $0x60] sm:$0xff]
    %v485 = vld [vmem:[#allocation8 + $0x68] sm:$0xff]
    %v486 = vld [vmem:[#allocation8 + $0x70] sm:$0xff]
    %v487 = vld [vmem:[#allocation8 + $0x78] sm:$0xff]
    %488 = vmatprep.subr.mxu0 0.0
    %489 = vmatpush1.msra.mxu0 %v487
    %490 = vmatprep.subr.mxu0 0.0
    %491 = vmatpush1.msra.mxu0 %v486
    %492 = vmatprep.subr.mxu0 0.0
    %493 = vmatpush1.msra.mxu0 %v485
    %494 = vmatprep.subr.mxu0 0.0
    %495 = vmatpush1.msra.mxu0 %v484
    %496 = vmatprep.subr.mxu0 0.0
    %497 = vmatpush1.msra.mxu0 %v483
    %498 = vmatprep.subr.mxu0 0.0
    %499 = vmatpush1.msra.mxu0 %v482
    %500 = vmatprep.subr.mxu0 0.0
    %501 = vmatpush1.msra.mxu0 %v481
    %502 = vmatprep.subr.mxu0 0.0
    %503 = vmatpush1.msra.mxu0 %v480
    %504 = vmatprep.subr.mxu0 0.0
    %505 = vmatpush1.msra.mxu0 %v479
    %506 = vmatprep.subr.mxu0 0.0
    %507 = vmatpush1.msra.mxu0 %v478
    %508 = vmatprep.subr.mxu0 0.0
    %509 = vmatpush1.msra.mxu0 %v477
    %510 = vmatprep.subr.mxu0 0.0
    %511 = vmatpush1.msra.mxu0 %v476
    %512 = vmatprep.subr.mxu0 0.0
    %513 = vmatpush1.msra.mxu0 %v475
    %514 = vmatprep.subr.mxu0 0.0
    %515 = vmatpush1.msra.mxu0 %v474
    %516 = vmatprep.subr.mxu0 0.0
    %517 = vmatpush1.msra.mxu0 %v473
    %518 = vmatprep.subr.mxu0 0.0
    %519 = vmatpush1.msra.mxu0 %v472
    %520 = vmatprep.subr.mxu0 0.0
    %521 = vmatpush2.msra.mxu0 0.0
    %522 = vmatprep.subr.mxu0 0.0
    %523 = vmatpush2.msra.mxu0 0.0
    %524 = vmatprep.subr.mxu0 0.0
    %525 = vmatpush2.msra.mxu0 0.0
    %526 = vmatprep.subr.mxu0 0.0
    %527 = vmatpush2.msra.mxu0 0.0
    %528 = vmatprep.subr.mxu0 0.0
    %529 = vmatpush2.msra.mxu0 0.0
    %530 = vmatprep.subr.mxu0 0.0
    %531 = vmatpush2.msra.mxu0 0.0
    %532 = vmatprep.subr.mxu0 0.0
    %533 = vmatpush2.msra.mxu0 0.0
    %534 = vmatprep.subr.mxu0 0.0
    %535 = vmatpush2.msra.mxu0 0.0
    %536 = vmatprep.subr.mxu0 0.0
    %537 = vmatpush2.msra.mxu0 0.0
    %538 = vmatprep.subr.mxu0 0.0
    %539 = vmatpush2.msra.mxu0 0.0
    %540 = vmatprep.subr.mxu0 0.0
    %541 = vmatpush2.msra.mxu0 0.0
    %542 = vmatprep.subr.mxu0 0.0
    %543 = vmatpush2.msra.mxu0 0.0
    %544 = vmatprep.subr.mxu0 0.0
    %545 = vmatpush2.msra.mxu0 0.0
    %546 = vmatprep.subr.mxu0 0.0
    %547 = vmatpush2.msra.mxu0 0.0
    %548 = vmatprep.subr.mxu0 0.0
    %549 = vmatpush2.msra.mxu0 0.0
    %550 = vmatprep.subr.mxu0 0.0
    %551 = vmatpush2.msra.mxu0 0.0
    %552 = vmatprep.mubr.f32.mxu0 0.0
    %553 = vmatmul.mubr.f32.gmra.mxu0 %v456
    %v554 = vpop.f32.mrf.mxu0
    %v555 = vadd.f32 0.0, %v554
    %v556 = vpop.f32.mrf.mxu0
    %557 = vmatprep.mubr.f32.mxu0 0.0
    %558 = vmatmul.mubr.f32.gmra.mxu0 %v457
    %v559 = vpop.f32.mrf.mxu0
    %v560 = vadd.f32 0.0, %v559
    %v561 = vpop.f32.mrf.mxu0
    %562 = vmatprep.mubr.f32.mxu0 0.0
    %563 = vmatmul.mubr.f32.gmra.mxu0 %v458
    %v564 = vpop.f32.mrf.mxu0
    %v565 = vadd.f32 0.0, %v564
    %v566 = vpop.f32.mrf.mxu0
    %567 = vmatprep.mubr.f32.mxu0 0.0
    %568 = vmatmul.mubr.f32.gmra.mxu0 %v459
    %v569 = vpop.f32.mrf.mxu0
    %v570 = vadd.f32 0.0, %v569
    %v571 = vpop.f32.mrf.mxu0
    %572 = vmatprep.mubr.f32.mxu0 0.0
    %573 = vmatmul.mubr.f32.gmra.mxu0 %v460
    %v574 = vpop.f32.mrf.mxu0
    %v575 = vadd.f32 0.0, %v574
    %v576 = vpop.f32.mrf.mxu0
    %577 = vmatprep.mubr.f32.mxu0 0.0
    %578 = vmatmul.mubr.f32.gmra.mxu0 %v461
    %v579 = vpop.f32.mrf.mxu0
    %v580 = vadd.f32 0.0, %v579
    %v581 = vpop.f32.mrf.mxu0
    %582 = vmatprep.mubr.f32.mxu0 0.0
    %583 = vmatmul.mubr.f32.gmra.mxu0 %v462
    %v584 = vpop.f32.mrf.mxu0
    %v585 = vadd.f32 0.0, %v584
    %v586 = vpop.f32.mrf.mxu0
    %587 = vmatprep.mubr.f32.mxu0 0.0
    %588 = vmatmul.mubr.f32.gmra.mxu0 %v463
    %v589 = vpop.f32.mrf.mxu0
    %v590 = vadd.f32 0.0, %v589
    %v591 = vpop.f32.mrf.mxu0
    %592 = vmatprep.mubr.f32.mxu0 0.0
    %593 = vmatmul.mubr.f32.gmra.mxu0 %v464
    %v594 = vpop.f32.mrf.mxu0
    %v595 = vadd.f32 0.0, %v594
    %v596 = vpop.f32.mrf.mxu0
    %597 = vmatprep.mubr.f32.mxu0 0.0
    %598 = vmatmul.mubr.f32.gmra.mxu0 %v465
    %v599 = vpop.f32.mrf.mxu0
    %v600 = vadd.f32 0.0, %v599
    %v601 = vpop.f32.mrf.mxu0
    %602 = vmatprep.mubr.f32.mxu0 0.0
    %603 = vmatmul.mubr.f32.gmra.mxu0 %v466
    %v604 = vpop.f32.mrf.mxu0
    %v605 = vadd.f32 0.0, %v604
    %v606 = vpop.f32.mrf.mxu0
    %607 = vmatprep.mubr.f32.mxu0 0.0
    %608 = vmatmul.mubr.f32.gmra.mxu0 %v467
    %v609 = vpop.f32.mrf.mxu0
    %v610 = vadd.f32 0.0, %v609
    %v611 = vpop.f32.mrf.mxu0
    %612 = vmatprep.mubr.f32.mxu0 0.0
    %613 = vmatmul.mubr.f32.gmra.mxu0 %v468
    %v614 = vpop.f32.mrf.mxu0
    %v615 = vadd.f32 0.0, %v614
    %v616 = vpop.f32.mrf.mxu0
    %617 = vmatprep.mubr.f32.mxu0 0.0
    %618 = vmatmul.mubr.f32.gmra.mxu0 %v469
    %v619 = vpop.f32.mrf.mxu0
    %v620 = vadd.f32 0.0, %v619
    %v621 = vpop.f32.mrf.mxu0
    %622 = vmatprep.mubr.f32.mxu0 0.0
    %623 = vmatmul.mubr.f32.gmra.mxu0 %v470
    %v624 = vpop.f32.mrf.mxu0
    %v625 = vadd.f32 0.0, %v624
    %v626 = vpop.f32.mrf.mxu0
    %627 = vmatprep.mubr.f32.mxu0 0.0
    %628 = vmatmul.mubr.f32.gmra.mxu0 %v471
    %v629 = vpop.f32.mrf.mxu0
    %v630 = vadd.f32 0.0, %v629
    %v631 = vpop.f32.mrf.mxu0
    %632 = vdwg.mxu0
    %v633 = vld [vmem:[%s5] sm:$0x1]
    %v635 = vlaneseq
    %v636 = vshrl.u32 %v635, 7
    %v637 = vsub.s32 0, %v636
    %v638 = vrot.slane %v633, %v637
    %640 = vmatprep.subr.mxu0 0.0
    %641 = vmatpush1.msra.mxu0 %v630
    %642 = vmatprep.subr.mxu0 0.0
    %643 = vmatpush1.msra.mxu0 %v625
    %644 = vmatprep.subr.mxu0 0.0
    %645 = vmatpush1.msra.mxu0 %v620
    %646 = vmatprep.subr.mxu0 0.0
    %647 = vmatpush1.msra.mxu0 %v615
    %648 = vmatprep.subr.mxu0 0.0
    %649 = vmatpush1.msra.mxu0 %v610
    %650 = vmatprep.subr.mxu0 0.0
    %651 = vmatpush1.msra.mxu0 %v605
    %652 = vmatprep.subr.mxu0 0.0
    %653 = vmatpush1.msra.mxu0 %v600
    %654 = vmatprep.subr.mxu0 0.0
    %655 = vmatpush1.msra.mxu0 %v595
    %656 = vmatprep.subr.mxu0 0.0
    %657 = vmatpush1.msra.mxu0 %v590
    %658 = vmatprep.subr.mxu0 0.0
    %659 = vmatpush1.msra.mxu0 %v585
    %660 = vmatprep.subr.mxu0 0.0
    %661 = vmatpush1.msra.mxu0 %v580
    %662 = vmatprep.subr.mxu0 0.0
    %663 = vmatpush1.msra.mxu0 %v575
    %664 = vmatprep.subr.mxu0 0.0
    %665 = vmatpush1.msra.mxu0 %v570
    %666 = vmatprep.subr.mxu0 0.0
    %667 = vmatpush1.msra.mxu0 %v565
    %668 = vmatprep.subr.mxu0 0.0
    %669 = vmatpush1.msra.mxu0 %v560
    %670 = vmatprep.subr.mxu0 0.0
    %671 = vmatpush1.msra.mxu0 %v555
    %672 = vmatprep.subr.mxu0 0.0
    %673 = vmatpush2.msra.mxu0 0.0
    %674 = vmatprep.subr.mxu0 0.0
    %675 = vmatpush2.msra.mxu0 0.0
    %676 = vmatprep.subr.mxu0 0.0
    %677 = vmatpush2.msra.mxu0 0.0
    %678 = vmatprep.subr.mxu0 0.0
    %679 = vmatpush2.msra.mxu0 0.0
    %680 = vmatprep.subr.mxu0 0.0
    %681 = vmatpush2.msra.mxu0 0.0
    %682 = vmatprep.subr.mxu0 0.0
    %683 = vmatpush2.msra.mxu0 0.0
    %684 = vmatprep.subr.mxu0 0.0
    %685 = vmatpush2.msra.mxu0 0.0
    %686 = vmatprep.subr.mxu0 0.0
    %687 = vmatpush2.msra.mxu0 0.0
    %688 = vmatprep.subr.mxu0 0.0
    %689 = vmatpush2.msra.mxu0 0.0
    %690 = vmatprep.subr.mxu0 0.0
    %691 = vmatpush2.msra.mxu0 0.0
    %692 = vmatprep.subr.mxu0 0.0
    %693 = vmatpush2.msra.mxu0 0.0
    %694 = vmatprep.subr.mxu0 0.0
    %695 = vmatpush2.msra.mxu0 0.0
    %696 = vmatprep.subr.mxu0 0.0
    %697 = vmatpush2.msra.mxu0 0.0
    %698 = vmatprep.subr.mxu0 0.0
    %699 = vmatpush2.msra.mxu0 0.0
    %700 = vmatprep.subr.mxu0 0.0
    %701 = vmatpush2.msra.mxu0 0.0
    %702 = vmatprep.subr.mxu0 0.0
    %703 = vmatpush2.msra.mxu0 0.0
    %704 = vmatprep.mubr.f32.mxu0 0.0
    %705 = vmatmul.mubr.f32.gmra.mxu0 %v256
    %v706 = vpop.f32.mrf.mxu0
    %v707 = vadd.f32 %v638, %v706
    %v708 = vpop.f32.mrf.mxu0
    %709 = vmatprep.mubr.f32.mxu0 0.0
    %710 = vmatmul.mubr.f32.gmra.mxu0 %v257
    %v711 = vpop.f32.mrf.mxu0
    %v712 = vadd.f32 %v638, %v711
    %v713 = vpop.f32.mrf.mxu0
    %714 = vmatprep.mubr.f32.mxu0 0.0
    %715 = vmatmul.mubr.f32.gmra.mxu0 %v258
    %v716 = vpop.f32.mrf.mxu0
    %v717 = vadd.f32 %v638, %v716
    %v718 = vpop.f32.mrf.mxu0
    %719 = vmatprep.mubr.f32.mxu0 0.0
    %720 = vmatmul.mubr.f32.gmra.mxu0 %v259
    %v721 = vpop.f32.mrf.mxu0
    %v722 = vadd.f32 %v638, %v721
    %v723 = vpop.f32.mrf.mxu0
    %724 = vmatprep.mubr.f32.mxu0 0.0
    %725 = vmatmul.mubr.f32.gmra.mxu0 %v260
    %v726 = vpop.f32.mrf.mxu0
    %v727 = vadd.f32 %v638, %v726
    %v728 = vpop.f32.mrf.mxu0
    %729 = vmatprep.mubr.f32.mxu0 0.0
    %730 = vmatmul.mubr.f32.gmra.mxu0 %v261
    %v731 = vpop.f32.mrf.mxu0
    %v732 = vadd.f32 %v638, %v731
    %v733 = vpop.f32.mrf.mxu0
    %734 = vmatprep.mubr.f32.mxu0 0.0
    %735 = vmatmul.mubr.f32.gmra.mxu0 %v262
    %v736 = vpop.f32.mrf.mxu0
    %v737 = vadd.f32 %v638, %v736
    %v738 = vpop.f32.mrf.mxu0
    %739 = vmatprep.mubr.f32.mxu0 0.0
    %740 = vmatmul.mubr.f32.gmra.mxu0 %v263
    %v741 = vpop.f32.mrf.mxu0
    %v742 = vadd.f32 %v638, %v741
    %v743 = vpop.f32.mrf.mxu0
    %744 = vmatprep.mubr.f32.mxu0 0.0
    %745 = vmatmul.mubr.f32.gmra.mxu0 %v264
    %v746 = vpop.f32.mrf.mxu0
    %v747 = vadd.f32 %v638, %v746
    %v748 = vpop.f32.mrf.mxu0
    %749 = vmatprep.mubr.f32.mxu0 0.0
    %750 = vmatmul.mubr.f32.gmra.mxu0 %v265
    %v751 = vpop.f32.mrf.mxu0
    %v752 = vadd.f32 %v638, %v751
    %v753 = vpop.f32.mrf.mxu0
    %754 = vmatprep.mubr.f32.mxu0 0.0
    %755 = vmatmul.mubr.f32.gmra.mxu0 %v266
    %v756 = vpop.f32.mrf.mxu0
    %v757 = vadd.f32 %v638, %v756
    %v758 = vpop.f32.mrf.mxu0
    %759 = vmatprep.mubr.f32.mxu0 0.0
    %760 = vmatmul.mubr.f32.gmra.mxu0 %v267
    %v761 = vpop.f32.mrf.mxu0
    %v762 = vadd.f32 %v638, %v761
    %v763 = vpop.f32.mrf.mxu0
    %764 = vmatprep.mubr.f32.mxu0 0.0
    %765 = vmatmul.mubr.f32.gmra.mxu0 %v268
    %v766 = vpop.f32.mrf.mxu0
    %v767 = vadd.f32 %v638, %v766
    %v768 = vpop.f32.mrf.mxu0
    %769 = vmatprep.mubr.f32.mxu0 0.0
    %770 = vmatmul.mubr.f32.gmra.mxu0 %v269
    %v771 = vpop.f32.mrf.mxu0
    %v772 = vadd.f32 %v638, %v771
    %v773 = vpop.f32.mrf.mxu0
    %774 = vmatprep.mubr.f32.mxu0 0.0
    %775 = vmatmul.mubr.f32.gmra.mxu0 %v270
    %v776 = vpop.f32.mrf.mxu0
    %v777 = vadd.f32 %v638, %v776
    %v778 = vpop.f32.mrf.mxu0
    %779 = vmatprep.mubr.f32.mxu0 0.0
    %780 = vmatmul.mubr.f32.gmra.mxu0 %v271
    %v781 = vpop.f32.mrf.mxu0
    %v782 = vadd.f32 %v638, %v781
    %v783 = vpop.f32.mrf.mxu0
    %784 = vdwg.mxu0
    %vm785 = vcmp.gt.f32.partialorder %v707, 0.0
    %vm786 = vcmp.gt.f32.partialorder %v712, 0.0
    %vm787 = vcmp.gt.f32.partialorder %v717, 0.0
    %vm788 = vcmp.gt.f32.partialorder %v722, 0.0
    %vm789 = vcmp.gt.f32.partialorder %v727, 0.0
    %vm790 = vcmp.gt.f32.partialorder %v732, 0.0
    %vm791 = vcmp.gt.f32.partialorder %v737, 0.0
    %vm792 = vcmp.gt.f32.partialorder %v742, 0.0
    %vm793 = vcmp.gt.f32.partialorder %v747, 0.0
    %vm794 = vcmp.gt.f32.partialorder %v752, 0.0
    %vm795 = vcmp.gt.f32.partialorder %v757, 0.0
    %vm796 = vcmp.gt.f32.partialorder %v762, 0.0
    %vm797 = vcmp.gt.f32.partialorder %v767, 0.0
    %vm798 = vcmp.gt.f32.partialorder %v772, 0.0
    %vm799 = vcmp.gt.f32.partialorder %v777, 0.0
    %vm800 = vcmp.gt.f32.partialorder %v782, 0.0
    %v801 = vmul.f32 %v707, 0.01
    %v802 = vmul.f32 %v712, 0.01
    %v803 = vmul.f32 %v717, 0.01
    %v804 = vmul.f32 %v722, 0.01
    %v805 = vmul.f32 %v727, 0.01
    %v806 = vmul.f32 %v732, 0.01
    %v807 = vmul.f32 %v737, 0.01
    %v808 = vmul.f32 %v742, 0.01
    %v809 = vmul.f32 %v747, 0.01
    %v810 = vmul.f32 %v752, 0.01
    %v811 = vmul.f32 %v757, 0.01
    %v812 = vmul.f32 %v762, 0.01
    %v813 = vmul.f32 %v767, 0.01
    %v814 = vmul.f32 %v772, 0.01
    %v815 = vmul.f32 %v777, 0.01
    %v816 = vmul.f32 %v782, 0.01
    %v817 = vsel %vm785, %v707, %v801
    %v818 = vsel %vm786, %v712, %v802
    %v819 = vsel %vm787, %v717, %v803
    %v820 = vsel %vm788, %v722, %v804
    %v821 = vsel %vm789, %v727, %v805
    %v822 = vsel %vm790, %v732, %v806
    %v823 = vsel %vm791, %v737, %v807
    %v824 = vsel %vm792, %v742, %v808
    %v825 = vsel %vm793, %v747, %v809
    %v826 = vsel %vm794, %v752, %v810
    %v827 = vsel %vm795, %v757, %v811
    %v828 = vsel %vm796, %v762, %v812
    %v829 = vsel %vm797, %v767, %v813
    %v830 = vsel %vm798, %v772, %v814
    %v831 = vsel %vm799, %v777, %v815
    %v832 = vsel %vm800, %v782, %v816
    %833 = vst [vmem:[#allocation10] sm:$0xff] %v817
    %834 = vst [vmem:[#allocation10 + $0x8] sm:$0xff] %v818
    %835 = vst [vmem:[#allocation10 + $0x10] sm:$0xff] %v819
    %836 = vst [vmem:[#allocation10 + $0x18] sm:$0xff] %v820
    %837 = vst [vmem:[#allocation10 + $0x20] sm:$0xff] %v821
    %838 = vst [vmem:[#allocation10 + $0x28] sm:$0xff] %v822
    %839 = vst [vmem:[#allocation10 + $0x30] sm:$0xff] %v823
    %840 = vst [vmem:[#allocation10 + $0x38] sm:$0xff] %v824
    %841 = vst [vmem:[#allocation10 + $0x40] sm:$0xff] %v825
    %842 = vst [vmem:[#allocation10 + $0x48] sm:$0xff] %v826
    %843 = vst [vmem:[#allocation10 + $0x50] sm:$0xff] %v827
    %844 = vst [vmem:[#allocation10 + $0x58] sm:$0xff] %v828
    %845 = vst [vmem:[#allocation10 + $0x60] sm:$0xff] %v829
    %846 = vst [vmem:[#allocation10 + $0x68] sm:$0xff] %v830
    %847 = vst [vmem:[#allocation10 + $0x70] sm:$0xff] %v831
    %848 = vst [vmem:[#allocation10 + $0x78] sm:$0xff] %v832
    // Predicated region
    $region42: #{tpu_custom_call.1} parent=1 // pred_check
      _
    $region43: #{tpu_custom_call.1} parent=1 // pred_check_branch
      %850 = sbr.rel (0) target = $region45
    $region44: #{tpu_custom_call.1} parent=1 // pred_region
      %s852 = ssub.s32 2048, 2048
      %853 = vsyncadd [#allocation4], %s852
      %s854 = sshll.u32 [#allocation10], 4
      %s855 = int_to_ptr.vmem [resolvable:$true] %s854
      %860 = dma.vmem_to_hbm [thread:$0]  %s855, 2048, %s6, [#allocation4], 128, 128, 8
    $region45: #{tpu_custom_call.1} parent=1 // pred_fallthru
      _
    // Predicated region
    $region46: #{tpu_custom_call.1} parent=1 // pred_check
      _
    $region47: #{tpu_custom_call.1} parent=1 // pred_check_branch
      %862 = sbr.rel (0) target = $region49
    $region48: #{tpu_custom_call.1} parent=1 // pred_region
      %863 = dma.done [#allocation4], 2048
    $region49: #{tpu_custom_call.1} parent=1 // pred_fallthru
      _
    %864 = vsyncpa [#allocation3], 1
    %865 = vsyncpa [#allocation6], 1
    %866 = vsyncpa [#allocation9], 1
    %867 = vsyncpa [#allocation4], 1

</llo_original>
